<compile_context>
chip_gen: v7x
topology: tpu7x:2x2x1
jax: 0.10.0
libtpu: 0.0.40
codegen_flags: <defaults>
</compile_context>

<pallas_src>
import math

import jax
import jax.numpy as jnp
from jax.experimental import pallas as pl
from jax.experimental.pallas import tpu as pltpu

_LANE = 128
_SUBLANE = 8
# Per-block byte budget: 4 live buffers (2x in + 2x out) -> ~24 MiB peak.
_BLOCK_BYTES = 6 * 1024 * 1024
# Explicit scoped-VMEM limit: above v5e's 16 MiB default, below v7x's 64 MiB
# physical capacity.
_VMEM_LIMIT_BYTES = 48 * 1024 * 1024


def _copy_kernel(x_ref, o_ref):
    # Pure lane-dense contiguous copy: one vld/vst stream, no relayout.
    o_ref[...] = x_ref[...]


def _slab_layout(total: int, itemsize: int):
    """Lane-dense 2D slab (rows, L) with L % 128 == 0 (requires total % 128 == 0)."""
    max_lane_elems = max(_LANE, _BLOCK_BYTES // (_SUBLANE * itemsize))
    L = _LANE
    while (total % (2 * L) == 0
           and total // (2 * L) >= _SUBLANE
           and 2 * L <= max_lane_elems):
        L *= 2
    return total // L, L


def _choose_rows(rows: int, row_bytes: int) -> int:
    """Sublane tile: multiple of 8 within the byte budget; tail handled by cdiv masking."""
    max_rows = max(1, _BLOCK_BYTES // row_bytes)
    if rows < _SUBLANE:
        return rows  # full extent: always a legal block dim
    tb = (min(rows, max_rows) // _SUBLANE) * _SUBLANE
    return max(tb, _SUBLANE)


def flatten_pallas(x: jax.Array) -> jax.Array:
    """Pallas TPU implementation of Flatten.forward: x.view(B, -1)."""
    B = x.shape[0]
    flat = math.prod(x.shape[1:])
    total = B * flat
    itemsize = jnp.dtype(x.dtype).itemsize

    if total % _LANE == 0:
        # Lane-dense slab decoupled from B: unmasked, full-vreg stores
        # regardless of how small or odd the batch dimension is.
        rows, lanes = _slab_layout(total, itemsize)
        x2 = jnp.reshape(x, (rows, lanes))          # metadata-only
        tb = _choose_rows(rows, lanes * itemsize)
        tf = lanes
        copy_shape = (rows, lanes)
    else:
        # Fallback: tile the (B, flat) view.  Tiles stay (8, 128)-aligned (or
        # full-extent), the byte budget is enforced on every branch, and the
        # remainder blocks are handled by cdiv + Pallas tail masking.
        x2 = jnp.reshape(x, (B, flat))              # metadata-only
        budget_elems = _BLOCK_BYTES // itemsize
        if flat >= _LANE:
            tf_budget = max(_LANE, ((budget_elems // _SUBLANE) // _LANE) * _LANE)
            tf = min((flat // _LANE) * _LANE, tf_budget)
        else:
            tf = flat                               # full extent: legal block dim
        tb = _choose_rows(B, tf * itemsize)
        copy_shape = (B, flat)

    grid = (pl.cdiv(copy_shape[0], tb), pl.cdiv(copy_shape[1], tf))

    out2 = pl.pallas_call(
        _copy_kernel,
        out_shape=jax.ShapeDtypeStruct(copy_shape, x.dtype),
        grid_spec=pltpu.PrefetchScalarGridSpec(
            num_scalar_prefetch=0,
            grid=grid,
            in_specs=[pl.BlockSpec((tb, tf), lambda i, j: (i, j))],
            out_specs=pl.BlockSpec((tb, tf), lambda i, j: (i, j)),
        ),
        compiler_params=pltpu.CompilerParams(
            dimension_semantics=("parallel", "parallel"),
            vmem_limit_bytes=_VMEM_LIMIT_BYTES,
        ),
        cost_estimate=pl.CostEstimate(
            flops=0,
            transcendentals=0,
            bytes_accessed=2 * total * itemsize,
        ),
    )(x2)

    # Metadata-only view back to the requested flattened shape.
    return jnp.reshape(out2, (B, flat))


if __name__ == "__main__":
    key = jax.random.PRNGKey(0)
    # Small CIFAR-like shapes: batch=2, channels=4, spatial=16x16.
    B, C, H, W = 2, 4, 16, 16
    x = jax.random.normal(key, (B, C, H, W), dtype=jnp.float32)

    out = flatten_pallas(x)
    jax.block_until_ready(out)

    # Reference: exact flatten semantics (view(B, -1) on contiguous NCHW).
    ref = jnp.reshape(x, (B, C * H * W))
    assert out.shape == (B, C * H * W), out.shape
    assert out.dtype == x.dtype, out.dtype
    assert bool(jnp.array_equal(out, ref)), "mismatch vs reference flatten"

    print("KERNEL_OK")
</pallas_src>

<mosaic_0001>
module attributes {stable_mosaic.version = 11 : i64} {
  func.func @_copy_kernel(%arg0: i32, %arg1: i32, %arg2: memref<8x256xf32, #tpu.memory_space<vmem>>, %arg3: memref<8x256xf32, #tpu.memory_space<vmem>>) attributes {dimension_semantics = [#tpu.dimension_semantics<parallel>, #tpu.dimension_semantics<parallel>], iteration_bounds = array<i64: 1, 1>, scalar_prefetch = 0 : i64, scratch_operands = 0 : i64, tpu.core_type = #tpu.core_type<tc>, window_params = [{transform_indices = @transform_0, window_bounds = array<i64: 8, 256>}, {transform_indices = @transform_1, window_bounds = array<i64: 8, 256>}]} {
    %c0 = arith.constant 0 : index
    %c0_0 = arith.constant 0 : index
    %0 = vector.load %arg2[%c0, %c0_0] : memref<8x256xf32, #tpu.memory_space<vmem>>, vector<8x256xf32>
    %c0_1 = arith.constant 0 : index
    %c0_2 = arith.constant 0 : index
    %1 = vector.load %arg3[%c0_1, %c0_2] : memref<8x256xf32, #tpu.memory_space<vmem>>, vector<8x256xf32>
    tpu.vector_store %arg3[%c0_1, %c0_2], %0 {strides = array<i32>} : memref<8x256xf32, #tpu.memory_space<vmem>>, vector<8x256xf32>,
    return
  }
  func.func @transform_0(%arg0: i32, %arg1: i32) -> (i32, i32) {
    %c0_i32 = arith.constant 0 : i32
    return %arg0, %arg1 : i32, i32
  }
  func.func @transform_1(%arg0: i32, %arg1: i32) -> (i32, i32) {
    %c0_i32 = arith.constant 0 : i32
    return %arg0, %arg1 : i32, i32
  }
}

</mosaic_0001>

<llo_original>
// kernel: tpu_custom_call.1
$region0: #{tpu_custom_call.1}
  #allocation0 [shape = 'u32[]', space=smem, size = 0x4, offset = 0x4, fixed_abs, tag = 'smem constant byte address 0x4 - core index']
  #allocation1 [shape = 'u32[144,128]{1,0:T(1,128)}', space=vmem, size = 0x12000, scoped, tag = 'internal scratch']
  %s0 = inlined_call_operand.hbm [shape: f32[8,256], index: 0, kind: input, shape index: {}]
  %s1 = inlined_call_operand.hbm [shape: f32[8,256], index: 1, kind: output, shape index: {}]
  %s2 = sld [smem:[#allocation0]]
  $region18: #{tpu_custom_call.1} parent=0
    _
  %s4 = ssub.s32 1, %s2
  %s5 = scalar_select 0, %s4, %s2
  $region1: #{tpu_custom_call.1} parent=0
    #allocation2 [shape = 'u8[8192]{0}', space=vmem, size = 0x2000, scoped, tag = 'input window, operand 0, single buffered']
    #allocation3 [shape = 's32[1]{0}', space=sflag, size = 0x4, scoped, tag = 'scoped memory for tpu_custom_call.1']
    #allocation4 [shape = 's32[1]{0}', space=sflag, size = 0x4, scoped, tag = 'scoped memory for tpu_custom_call.1']
    #allocation5 [shape = 'u8[8192]{0}', space=vmem, size = 0x2000, scoped, tag = 'output window, operand 0, single buffered']
    %6 = vsyncpa [#allocation3], 0
    %7 = vsyncpa [#allocation4], 0
    // Predicated region
    $region2: #{tpu_custom_call.1} parent=1 // pred_check
      _
    $region3: #{tpu_custom_call.1} parent=1 // pred_check_branch
      %9 = sbr.rel (0) target = $region5
    $region4: #{tpu_custom_call.1} parent=1 // pred_region
      %s11 = ssub.s32 256, 256
      %12 = vsyncadd [#allocation3], %s11
      %s14 = sshll.u32 [#allocation2], 4
      %s15 = int_to_ptr.vmem [resolvable:$true] %s14
      %17 = dma.hbm_to_vmem [thread:$0]  %s0, 256, %s15, [#allocation3]
    $region5: #{tpu_custom_call.1} parent=1 // pred_fallthru
      _
    // Predicated region
    $region6: #{tpu_custom_call.1} parent=1 // pred_check
      _
    $region7: #{tpu_custom_call.1} parent=1 // pred_check_branch
      %19 = sbr.rel (0) target = $region9
    $region8: #{tpu_custom_call.1} parent=1 // pred_region
      %20 = dma.done [#allocation3], 256
    $region9: #{tpu_custom_call.1} parent=1 // pred_fallthru
      _
    %v21 = vld [vmem:[#allocation2] sm:$0xff]
    %v22 = vld [vmem:[#allocation2 + $0x8] sm:$0xff]
    %23 = vst [vmem:[#allocation5] sm:$0xff] %v21
    %24 = vst [vmem:[#allocation5 + $0x8] sm:$0xff] %v22
    // Predicated region
    $region10: #{tpu_custom_call.1} parent=1 // pred_check
      _
    $region11: #{tpu_custom_call.1} parent=1 // pred_check_branch
      %26 = sbr.rel (0) target = $region13
    $region12: #{tpu_custom_call.1} parent=1 // pred_region
      %s28 = ssub.s32 256, 256
      %29 = vsyncadd [#allocation4], %s28
      %s31 = sshll.u32 [#allocation5], 4
      %s32 = int_to_ptr.vmem [resolvable:$true] %s31
      %34 = dma.vmem_to_hbm [thread:$0]  %s32, 256, %s1, [#allocation4]
    $region13: #{tpu_custom_call.1} parent=1 // pred_fallthru
      _
    // Predicated region
    $region14: #{tpu_custom_call.1} parent=1 // pred_check
      _
    $region15: #{tpu_custom_call.1} parent=1 // pred_check_branch
      %36 = sbr.rel (0) target = $region17
    $region16: #{tpu_custom_call.1} parent=1 // pred_region
      %37 = dma.done [#allocation4], 256
    $region17: #{tpu_custom_call.1} parent=1 // pred_fallthru
      _
    %38 = vsyncpa [#allocation3], 1
    %39 = vsyncpa [#allocation4], 1

</llo_original>
